<compile_context>
chip_gen: v5e
topology: v5e:2x2
jax: 0.10.0
libtpu: 0.0.40
codegen_flags: <defaults>
</compile_context>

<pallas_src>
import jax
import jax.numpy as jnp
from jax.experimental import pallas as pl
from jax.experimental.pallas import tpu as pltpu


def _round_up(x, m):
    return ((x + m - 1) // m) * m


def _mlp_kernel(x_ref, w1_ref, b1_ref, w2_ref, b2_ref, w3_ref, b3_ref, o_ref):
    # fc1 + ReLU  (bf16 matmul, f32 accumulate; bias/ReLU in f32)
    h1 = jnp.dot(x_ref[...], w1_ref[...], preferred_element_type=jnp.float32)
    h1 = jnp.maximum(h1 + b1_ref[...], 0.0)
    # fc2 + ReLU
    h2 = jnp.dot(h1.astype(jnp.bfloat16), w2_ref[...],
                 preferred_element_type=jnp.float32)
    h2 = jnp.maximum(h2 + b2_ref[...], 0.0)
    # fc3 (narrow, unpadded output) + numerically-safe sigmoid
    z = jnp.dot(h2.astype(jnp.bfloat16), w3_ref[...],
                preferred_element_type=jnp.float32) + b3_ref[...]
    z = jnp.maximum(z, -30.0)  # sigmoid(-30) ~ 1e-13; prevents exp overflow -> inf
    # exp -> EUP; approx reciprocal -> EUP (divide stays off the VPU)
    o_ref[...] = pl.reciprocal(1.0 + jnp.exp(-z), approx=True)


def _pick_tile_n(n):
    """Batch tile: whole batch for small N; large, even-step tiles otherwise."""
    if n <= 256:
        # Single grid step; round to a 16-row granule (bf16 sublane packing).
        return max(16, _round_up(n, 16))
    # Mid/large N: cap the tile near 4096 rows, and prefer an EVEN number of
    # grid steps so v7x can shard the "parallel" axis across its 2 TensorCores.
    num_steps = pl.cdiv(n, 4096)
    if num_steps % 2:
        num_steps += 1
    return max(256, _round_up(pl.cdiv(n, num_steps), 16))


def gnn_forward(x, params, *, tile_n=None):
    """fc1->relu->fc2->relu->fc3->sigmoid as one Pallas kernel over batch tiles."""
    w1, b1, w2, b2, w3, b3 = params
    n, d = x.shape
    h1_dim = w1.shape[1]
    h2_dim = w2.shape[1]
    out_dim = w3.shape[1]

    # bf16 for the streamed operands (x, weights); biases / accum / output stay f32.
    xb = x.astype(jnp.bfloat16)
    w1b, w2b, w3b = (w.astype(jnp.bfloat16) for w in (w1, w2, w3))

    # --- batch tiling: large tiles, remainder handled by padding ---
    if tile_n is None:
        tile_n = _pick_tile_n(n)
    num_tiles = pl.cdiv(n, tile_n)
    n_pad = num_tiles * tile_n
    if n_pad != n:
        xb = jnp.pad(xb, ((0, n_pad - n), (0, 0)))

    grid = (num_tiles,)

    def invariant(arr):
        # Grid-invariant block (weights/biases): constant index_map -> no re-DMA per step.
        return pl.BlockSpec(arr.shape, lambda i: (0,) * arr.ndim)

    flops = 2 * n_pad * (d * h1_dim + h1_dim * h2_dim + h2_dim * out_dim)
    transcendentals = 2 * n_pad * out_dim  # exp + approx reciprocal
    bytes_accessed = (
        2 * n_pad * d                      # x (bf16)
        + 4 * n_pad * out_dim              # output (f32, unpadded)
        + 2 * (d * h1_dim + h1_dim * h2_dim + h2_dim * out_dim)  # weights (bf16)
        + 4 * (h1_dim + h2_dim + out_dim)  # biases (f32)
    )

    out_padded = pl.pallas_call(
        _mlp_kernel,
        out_shape=jax.ShapeDtypeStruct((n_pad, out_dim), jnp.float32),
        grid_spec=pltpu.PrefetchScalarGridSpec(
            num_scalar_prefetch=0,
            grid=grid,
            in_specs=[
                pl.BlockSpec((tile_n, d), lambda i: (i, 0)),   # x tile
                invariant(w1b), invariant(b1),                  # fc1
                invariant(w2b), invariant(b2),                  # fc2
                invariant(w3b), invariant(b3),                  # fc3 (unpadded)
            ],
            # Narrow output written directly: last dim == full array dim, so the
            # few masked partial stores per tile are negligible vs. the old
            # 128x-padded write stream.
            out_specs=pl.BlockSpec((tile_n, out_dim), lambda i: (i, 0)),
        ),
        compiler_params=pltpu.CompilerParams(
            dimension_semantics=("parallel",),
        ),
        cost_estimate=pl.CostEstimate(
            flops=flops,
            transcendentals=transcendentals,
            bytes_accessed=bytes_accessed,
        ),
    )(xb, w1b, b1, w2b, b2, w3b, b3)

    # Strip batch padding only (no lane padding anymore).
    return out_padded[:n, :]


def init_params(key, input_dim, hidden_dim1, hidden_dim2, output_dim):
    """Deterministic init mimicking torch.nn.Linear (uniform +/- 1/sqrt(fan_in))."""
    def linear(key, fan_in, fan_out):
        kw, kb = jax.random.split(key)
        bound = 1.0 / jnp.sqrt(fan_in)
        w = jax.random.uniform(kw, (fan_in, fan_out), jnp.float32, -bound, bound)
        b = jax.random.uniform(kb, (1, fan_out), jnp.float32, -bound, bound)
        return w, b

    k1, k2, k3 = jax.random.split(key, 3)
    w1, b1 = linear(k1, input_dim, hidden_dim1)
    w2, b2 = linear(k2, hidden_dim1, hidden_dim2)
    w3, b3 = linear(k3, hidden_dim2, output_dim)
    return (w1, b1, w2, b2, w3, b3)


def gnn_reference(x, params):
    w1, b1, w2, b2, w3, b3 = params
    h1 = jnp.maximum(x @ w1 + b1, 0.0)
    h2 = jnp.maximum(h1 @ w2 + b2, 0.0)
    return jax.nn.sigmoid(h2 @ w3 + b3)


if __name__ == "__main__":
    # Small shapes consistent with the module: (batch, input_dim) scaled features.
    input_dim = 8
    hidden_dim1 = 64
    hidden_dim2 = 32
    output_dim = 1

    key = jax.random.PRNGKey(0)
    kx, kp, kx2, kx3 = jax.random.split(key, 4)
    params = init_params(kp, input_dim, hidden_dim1, hidden_dim2, output_dim)

    # bf16 inputs/weights + approx reciprocal epilogue -> relaxed tolerance vs f32 ref.
    ATOL = RTOL = 1e-2

    # Case 1: small batch -> single grid step, whole batch in one block.
    batch = 16
    x = jax.random.normal(kx, (batch, input_dim), jnp.float32)
    out = jax.block_until_ready(gnn_forward(x, params))
    ref = gnn_reference(x, params)
    assert out.shape == (batch, output_dim)
    assert jnp.allclose(out, ref, atol=ATOL, rtol=RTOL), "mismatch vs reference (case 1)"

    # Case 2: non-sublane-multiple batch -> exercises padding / remainder handling.
    batch2 = 50
    x2 = jax.random.normal(kx2, (batch2, input_dim), jnp.float32)
    out2 = jax.block_until_ready(gnn_forward(x2, params))
    ref2 = gnn_reference(x2, params)
    assert out2.shape == (batch2, output_dim)
    assert jnp.allclose(out2, ref2, atol=ATOL, rtol=RTOL), "mismatch vs reference (case 2)"

    # Case 3: mid-size batch -> multi-step (even) grid, exercises the tiled path.
    batch3 = 300
    x3 = jax.random.normal(kx3, (batch3, input_dim), jnp.float32)
    out3 = jax.block_until_ready(gnn_forward(x3, params))
    ref3 = gnn_reference(x3, params)
    assert out3.shape == (batch3, output_dim)
    assert jnp.allclose(out3, ref3, atol=ATOL, rtol=RTOL), "mismatch vs reference (case 3)"

    print("KERNEL_OK")
</pallas_src>

<mosaic_0001>
module attributes {stable_mosaic.version = 11 : i64} {
  func.func @_mlp_kernel(%arg0: i32, %arg1: memref<16x8xbf16, #tpu.memory_space<vmem>>, %arg2: memref<8x64xbf16, #tpu.memory_space<vmem>>, %arg3: memref<1x64xf32, #tpu.memory_space<vmem>>, %arg4: memref<64x32xbf16, #tpu.memory_space<vmem>>, %arg5: memref<1x32xf32, #tpu.memory_space<vmem>>, %arg6: memref<32x1xbf16, #tpu.memory_space<vmem>>, %arg7: memref<1x1xf32, #tpu.memory_space<vmem>>, %arg8: memref<16x1xf32, #tpu.memory_space<vmem>>) attributes {dimension_semantics = [#tpu.dimension_semantics<parallel>], iteration_bounds = array<i64: 1>, scalar_prefetch = 0 : i64, scratch_operands = 0 : i64, tpu.core_type = #tpu.core_type<tc>, window_params = [{transform_indices = @transform_0, window_bounds = array<i64: 16, 8>}, {pipeline_mode = #tpu.pipeline_mode<synchronous>, transform_indices = @transform_1, window_bounds = array<i64: 8, 64>}, {pipeline_mode = #tpu.pipeline_mode<synchronous>, transform_indices = @transform_2, window_bounds = array<i64: 1, 64>}, {pipeline_mode = #tpu.pipeline_mode<synchronous>, transform_indices = @transform_3, window_bounds = array<i64: 64, 32>}, {pipeline_mode = #tpu.pipeline_mode<synchronous>, transform_indices = @transform_4, window_bounds = array<i64: 1, 32>}, {pipeline_mode = #tpu.pipeline_mode<synchronous>, transform_indices = @transform_5, window_bounds = array<i64: 32, 1>}, {pipeline_mode = #tpu.pipeline_mode<synchronous>, transform_indices = @transform_6, window_bounds = array<i64: 1, 1>}, {transform_indices = @transform_7, window_bounds = array<i64: 16, 1>}]} {
    %c0 = arith.constant 0 : index
    %c0_0 = arith.constant 0 : index
    %0 = vector.load %arg1[%c0, %c0_0] : memref<16x8xbf16, #tpu.memory_space<vmem>>, vector<16x8xbf16>
    %c0_1 = arith.constant 0 : index
    %c0_2 = arith.constant 0 : index
    %1 = vector.load %arg2[%c0_1, %c0_2] : memref<8x64xbf16, #tpu.memory_space<vmem>>, vector<8x64xbf16>
    %cst = arith.constant dense<0.000000e+00> : vector<16x64xf32>
    %2 = tpu.matmul %0, %1, %cst {dimension_numbers = #tpu.dot_dimension_numbers<[1], [0], [0], [1], [0, 0, 1, 1], [], []>} : vector<16x8xbf16>, vector<8x64xbf16>, vector<16x64xf32> -> vector<16x64xf32>
    %c0_3 = arith.constant 0 : index
    %c0_4 = arith.constant 0 : index
    %3 = vector.load %arg3[%c0_3, %c0_4] : memref<1x64xf32, #tpu.memory_space<vmem>>, vector<1x64xf32>
    %4 = vector.broadcast %3 : vector<1x64xf32> to vector<16x64xf32>
    %5 = arith.addf %2, %4 : vector<16x64xf32>
    %cst_5 = arith.constant 0.000000e+00 : f32
    %6 = vector.broadcast %cst_5 : f32 to vector<16x64xf32>
    %7 = arith.maximumf %5, %6 : vector<16x64xf32>
    %8 = arith.truncf %7 : vector<16x64xf32> to vector<16x64xbf16>
    %c0_6 = arith.constant 0 : index
    %c0_7 = arith.constant 0 : index
    %9 = vector.load %arg4[%c0_6, %c0_7] : memref<64x32xbf16, #tpu.memory_space<vmem>>, vector<64x32xbf16>
    %cst_8 = arith.constant dense<0.000000e+00> : vector<16x32xf32>
    %10 = tpu.matmul %8, %9, %cst_8 {dimension_numbers = #tpu.dot_dimension_numbers<[1], [0], [0], [1], [0, 0, 1, 1], [], []>} : vector<16x64xbf16>, vector<64x32xbf16>, vector<16x32xf32> -> vector<16x32xf32>
    %c0_9 = arith.constant 0 : index
    %c0_10 = arith.constant 0 : index
    %11 = vector.load %arg5[%c0_9, %c0_10] : memref<1x32xf32, #tpu.memory_space<vmem>>, vector<1x32xf32>
    %12 = vector.broadcast %11 : vector<1x32xf32> to vector<16x32xf32>
    %13 = arith.addf %10, %12 : vector<16x32xf32>
    %cst_11 = arith.constant 0.000000e+00 : f32
    %14 = vector.broadcast %cst_11 : f32 to vector<16x32xf32>
    %15 = arith.maximumf %13, %14 : vector<16x32xf32>
    %16 = arith.truncf %15 : vector<16x32xf32> to vector<16x32xbf16>
    %c0_12 = arith.constant 0 : index
    %c0_13 = arith.constant 0 : index
    %17 = vector.load %arg6[%c0_12, %c0_13] : memref<32x1xbf16, #tpu.memory_space<vmem>>, vector<32x1xbf16>
    %cst_14 = arith.constant dense<0.000000e+00> : vector<16x1xf32>
    %18 = tpu.matmul %16, %17, %cst_14 {dimension_numbers = #tpu.dot_dimension_numbers<[1], [0], [0], [1], [0, 0, 1, 1], [], []>} : vector<16x32xbf16>, vector<32x1xbf16>, vector<16x1xf32> -> vector<16x1xf32>
    %c0_15 = arith.constant 0 : index
    %c0_16 = arith.constant 0 : index
    %19 = vector.load %arg7[%c0_15, %c0_16] : memref<1x1xf32, #tpu.memory_space<vmem>>, vector<1x1xf32>
    %20 = vector.broadcast %19 : vector<1x1xf32> to vector<16x1xf32>
    %21 = arith.addf %18, %20 : vector<16x1xf32>
    %cst_17 = arith.constant -3.000000e+01 : f32
    %22 = vector.broadcast %cst_17 : f32 to vector<16x1xf32>
    %23 = arith.maximumf %21, %22 : vector<16x1xf32>
    %cst_18 = arith.constant 0.000000e+00 : f32
    %24 = vector.broadcast %cst_18 : f32 to vector<16x1xf32>
    %25 = arith.subf %24, %23 : vector<16x1xf32>
    %26 = math.exp %25 : vector<16x1xf32>
    %cst_19 = arith.constant 1.000000e+00 : f32
    %27 = vector.broadcast %cst_19 : f32 to vector<16x1xf32>
    %28 = arith.addf %27, %26 : vector<16x1xf32>
    %29 = tpu.reciprocal %28 {approx = true} : vector<16x1xf32> -> vector<16x1xf32>
    %c0_20 = arith.constant 0 : index
    %c0_21 = arith.constant 0 : index
    %30 = vector.load %arg8[%c0_20, %c0_21] : memref<16x1xf32, #tpu.memory_space<vmem>>, vector<16x1xf32>
    tpu.vector_store %arg8[%c0_20, %c0_21], %29 {strides = array<i32>} : memref<16x1xf32, #tpu.memory_space<vmem>>, vector<16x1xf32>,
    return
  }
  func.func @transform_0(%arg0: i32) -> (i32, i32) {
    %c0_i32 = arith.constant 0 : i32
    %c0_i32_0 = arith.constant 0 : i32
    return %arg0, %c0_i32 : i32, i32
  }
  func.func @transform_1(%arg0: i32) -> (i32, i32) {
    %c0_i32 = arith.constant 0 : i32
    %c0_i32_0 = arith.constant 0 : i32
    %c0_i32_1 = arith.constant 0 : i32
    return %c0_i32, %c0_i32_0 : i32, i32
  }
  func.func @transform_2(%arg0: i32) -> (i32, i32) {
    %c0_i32 = arith.constant 0 : i32
    %c0_i32_0 = arith.constant 0 : i32
    %c0_i32_1 = arith.constant 0 : i32
    return %c0_i32, %c0_i32_0 : i32, i32
  }
  func.func @transform_3(%arg0: i32) -> (i32, i32) {
    %c0_i32 = arith.constant 0 : i32
    %c0_i32_0 = arith.constant 0 : i32
    %c0_i32_1 = arith.constant 0 : i32
    return %c0_i32, %c0_i32_0 : i32, i32
  }
  func.func @transform_4(%arg0: i32) -> (i32, i32) {
    %c0_i32 = arith.constant 0 : i32
    %c0_i32_0 = arith.constant 0 : i32
    %c0_i32_1 = arith.constant 0 : i32
    return %c0_i32, %c0_i32_0 : i32, i32
  }
  func.func @transform_5(%arg0: i32) -> (i32, i32) {
    %c0_i32 = arith.constant 0 : i32
    %c0_i32_0 = arith.constant 0 : i32
    %c0_i32_1 = arith.constant 0 : i32
    return %c0_i32, %c0_i32_0 : i32, i32
  }
  func.func @transform_6(%arg0: i32) -> (i32, i32) {
    %c0_i32 = arith.constant 0 : i32
    %c0_i32_0 = arith.constant 0 : i32
    %c0_i32_1 = arith.constant 0 : i32
    return %c0_i32, %c0_i32_0 : i32, i32
  }
  func.func @transform_7(%arg0: i32) -> (i32, i32) {
    %c0_i32 = arith.constant 0 : i32
    %c0_i32_0 = arith.constant 0 : i32
    return %arg0, %c0_i32 : i32, i32
  }
}

</mosaic_0001>

<llo_original>
// kernel: tpu_custom_call.1
$region0: #{tpu_custom_call.1}
  #allocation0 [shape = 'u32[]', space=smem, size = 0x4, offset = 0x4, fixed_abs, tag = 'smem constant byte address 0x4 - core index']
  #allocation1 [shape = 'u32[72,128]{1,0:T(1,128)}', space=vmem, size = 0x9000, scoped, tag = 'internal scratch']
  #allocation2 [shape = 'f32[1,1]{1,0:T(1,128)S(1)}', space=vmem, size = 0x200, scoped, tag = 'scoped memory for tpu_custom_call.1']
  %s0 = inlined_call_operand.vmem [shape: bf16[16,8], index: 0, kind: input, shape index: {}]
  %s1 = inlined_call_operand.vmem [shape: bf16[8,64], index: 1, kind: input, shape index: {}]
  %s2 = inlined_call_operand.vmem [shape: f32[1,64], index: 2, kind: input, shape index: {}]
  %s3 = inlined_call_operand.vmem [shape: bf16[64,32], index: 3, kind: input, shape index: {}]
  %s4 = inlined_call_operand.vmem [shape: f32[1,32], index: 4, kind: input, shape index: {}]
  %s5 = inlined_call_operand.vmem [shape: bf16[32,1], index: 5, kind: input, shape index: {}]
  %s6 = inlined_call_operand.<no memory space> [shape: f32[1,1], index: 6, kind: input, shape index: {}]
  %s7 = inlined_call_operand.vmem [shape: f32[16,1], index: 7, kind: output, shape index: {}]
  %s8 = sld [smem:[#allocation0]]
  $region38: #{tpu_custom_call.1} parent=0
    _
  %s10 = ssub.s32 1, %s8
  %s11 = scalar_select 0, %s10, %s8
  %v12 = vstv %s6
  %13 = vst [vmem:[#allocation2] sm:$0x1] %v12
  // Predicated region
  $region2: #{tpu_custom_call.1} parent=0 // pred_check
    _
  $region3: #{tpu_custom_call.1} parent=0 // pred_check_branch
    %15 = sbr.rel (0) target = $region5
  $region4: #{tpu_custom_call.1} parent=0 // pred_region
    _
  $region5: #{tpu_custom_call.1} parent=0 // pred_fallthru
    _
  // Predicated region
  $region6: #{tpu_custom_call.1} parent=0 // pred_check
    _
  $region7: #{tpu_custom_call.1} parent=0 // pred_check_branch
    %17 = sbr.rel (0) target = $region9
  $region8: #{tpu_custom_call.1} parent=0 // pred_region
    _
  $region9: #{tpu_custom_call.1} parent=0 // pred_fallthru
    _
  // Predicated region
  $region10: #{tpu_custom_call.1} parent=0 // pred_check
    _
  $region11: #{tpu_custom_call.1} parent=0 // pred_check_branch
    %19 = sbr.rel (0) target = $region13
  $region12: #{tpu_custom_call.1} parent=0 // pred_region
    _
  $region13: #{tpu_custom_call.1} parent=0 // pred_fallthru
    _
  // Predicated region
  $region14: #{tpu_custom_call.1} parent=0 // pred_check
    _
  $region15: #{tpu_custom_call.1} parent=0 // pred_check_branch
    %21 = sbr.rel (0) target = $region17
  $region16: #{tpu_custom_call.1} parent=0 // pred_region
    _
  $region17: #{tpu_custom_call.1} parent=0 // pred_fallthru
    _
  // Predicated region
  $region18: #{tpu_custom_call.1} parent=0 // pred_check
    _
  $region19: #{tpu_custom_call.1} parent=0 // pred_check_branch
    %23 = sbr.rel (0) target = $region21
  $region20: #{tpu_custom_call.1} parent=0 // pred_region
    _
  $region21: #{tpu_custom_call.1} parent=0 // pred_fallthru
    _
  // Predicated region
  $region22: #{tpu_custom_call.1} parent=0 // pred_check
    _
  $region23: #{tpu_custom_call.1} parent=0 // pred_check_branch
    %25 = sbr.rel (0) target = $region25
  $region24: #{tpu_custom_call.1} parent=0 // pred_region
    _
  $region25: #{tpu_custom_call.1} parent=0 // pred_fallthru
    _
  // Predicated region
  $region26: #{tpu_custom_call.1} parent=0 // pred_check
    _
  $region27: #{tpu_custom_call.1} parent=0 // pred_check_branch
    %27 = sbr.rel (0) target = $region29
  $region28: #{tpu_custom_call.1} parent=0 // pred_region
    _
  $region29: #{tpu_custom_call.1} parent=0 // pred_fallthru
    _
  %v29 = vld [vmem:[%s0] sm:$0xf]
  %v30 = vld [vmem:[%s0 + $0x4] sm:$0xf]
  %v31 = vld [vmem:[%s1] sm:$0xf]
  %v32 = vld [vmem:[%s2] sm:$0x1]
  %v34 = vperm.slane %v32, 0
  %v38 = vunpack.c.l.b16 %v29
  %v39 = vunpack.c.l.b16 %v30
  %v40 = vpack.c.b16 %v39, %v38
  %vm41 = vcmask 64512
  %v43 = vsel %vm41, %v40, 0
  %vm45 = vcmask 1043456
  %v47 = vsel %vm45, %v31, 0
  %49 = vmatpush.bf16.msra.mxu0 0
  %50 = vmatpush.bf16.msra.mxu0 0
  %51 = vmatpush.bf16.msra.mxu0 0
  %52 = vmatpush.bf16.msra.mxu0 0
  %53 = vmatpush.bf16.msra.mxu0 0
  %54 = vmatpush.bf16.msra.mxu0 0
  %55 = vmatpush.bf16.msra.mxu0 0
  %56 = vmatpush.bf16.msra.mxu0 %v47
  %57 = vmatmul.bf16.gmra.mxu0 %v43
  %v58 = vpop.f32.mrf.mxu0
  %v59 = vadd.f32 %v34, %v58
  %v60 = vpop.f32.mrf.mxu0
  %v61 = vadd.f32 %v34, %v60
  %62 = vdwg.mxu0
  %v63 = vmax.f32 %v59, 0.0
  %v64 = vmax.f32 %v61, 0.0
  %v65 = vpack.c.bf16 %v64, %v63
  %v66 = vld [vmem:[%s3] sm:$0xf]
  %v67 = vld [vmem:[%s3 + $0x4] sm:$0xf]
  %v68 = vld [vmem:[%s3 + $0x8] sm:$0xf]
  %v69 = vld [vmem:[%s3 + $0xc] sm:$0xf]
  %v70 = vld [vmem:[%s3 + $0x10] sm:$0xf]
  %v71 = vld [vmem:[%s3 + $0x14] sm:$0xf]
  %v72 = vld [vmem:[%s3 + $0x18] sm:$0xf]
  %v73 = vld [vmem:[%s3 + $0x1c] sm:$0xf]
  %v74 = vld [vmem:[%s4] sm:$0x1]
  %v76 = vperm.slane %v74, 0
  %v86 = vunpack.c.l.b16 %v66
  %v87 = vunpack.c.l.b16 %v67
  %v88 = vunpack.c.l.b16 %v68
  %v89 = vunpack.c.l.b16 %v69
  %v90 = vunpack.c.l.b16 %v70
  %v91 = vunpack.c.l.b16 %v71
  %v92 = vunpack.c.l.b16 %v72
  %v93 = vunpack.c.l.b16 %v73
  %v94 = vpack.c.b16 %v87, %v86
  %v95 = vpack.c.b16 %v89, %v88
  %v96 = vpack.c.b16 %v91, %v90
  %v97 = vpack.c.b16 %v93, %v92
  %vm102 = vcmask 523264
  %v104 = vsel %vm102, %v65, 0
  %106 = vmatpush.bf16.msra.mxu0 0
  %107 = vmatpush.bf16.msra.mxu0 0
  %108 = vmatpush.bf16.msra.mxu0 0
  %109 = vmatpush.bf16.msra.mxu0 0
  %110 = vmatpush.bf16.msra.mxu0 %v97
  %111 = vmatpush.bf16.msra.mxu0 %v96
  %112 = vmatpush.bf16.msra.mxu0 %v95
  %113 = vmatpush.bf16.msra.mxu0 %v94
  %114 = vmatmul.bf16.gmra.mxu0 %v104
  %v115 = vpop.f32.mrf.mxu0
  %v116 = vadd.f32 %v76, %v115
  %v117 = vpop.f32.mrf.mxu0
  %v118 = vadd.f32 %v76, %v117
  %119 = vdwg.mxu0
  %v120 = vmax.f32 %v116, 0.0
  %v121 = vmax.f32 %v118, 0.0
  %v122 = vpack.c.bf16 %v121, %v120
  %v123 = vld [vmem:[%s5] sm:$0xf]
  %v124 = vld [vmem:[%s5 + $0x4] sm:$0xf]
  %v125 = vld [vmem:[%s5 + $0x8] sm:$0xf]
  %v126 = vld [vmem:[%s5 + $0xc] sm:$0xf]
  %v127 = vld [vmem:[#allocation2] sm:$0x1]
  %v129 = vperm.slane %v127, 0
  %v135 = vunpack.c.l.b16 %v123
  %v136 = vunpack.c.l.b16 %v124
  %v137 = vunpack.c.l.b16 %v125
  %v138 = vunpack.c.l.b16 %v126
  %v139 = vpack.c.b16 %v136, %v135
  %v140 = vpack.c.b16 %v138, %v137
  %vm143 = vcmask 261120
  %v145 = vsel %vm143, %v122, 0
  %147 = vmatpush.bf16.msra.mxu0 0
  %148 = vmatpush.bf16.msra.mxu0 0
  %149 = vmatpush.bf16.msra.mxu0 0
  %150 = vmatpush.bf16.msra.mxu0 0
  %151 = vmatpush.bf16.msra.mxu0 0
  %152 = vmatpush.bf16.msra.mxu0 0
  %153 = vmatpush.bf16.msra.mxu0 %v140
  %154 = vmatpush.bf16.msra.mxu0 %v139
  %155 = vmatmul.bf16.gmra.mxu0 %v145
  %v156 = vpop.f32.mrf.mxu0
  %v157 = vadd.f32 %v129, %v156
  %v158 = vpop.f32.mrf.mxu0
  %v159 = vadd.f32 %v129, %v158
  %160 = vdwg.mxu0
  %v161 = vmax.f32 %v157, -30.0
  %v162 = vmax.f32 %v159, -30.0
  %v163 = vsub.f32 0.0, %v161
  %v164 = vsub.f32 0.0, %v162
  %v165 = vmul.f32 %v163, 1.442695
  %v166 = vpow.pop %v165
  %v167 = vmul.f32 %v164, 1.442695
  %v168 = vpow.pop %v167
  %v169 = vadd.f32 %v166, 1.0
  %v170 = vadd.f32 %v168, 1.0
  %v171 = vrcp.pop %v169
  %v172 = vrcp.pop %v170
  %vm173 = vcmask 7168
  %174 = vst.msk [vmem:[%s7] sm:$0xff] %vm173, %v171
  %175 = vst.msk [vmem:[%s7 + $0x8] sm:$0xff] %vm173, %v172
  // Predicated region
  $region30: #{tpu_custom_call.1} parent=0 // pred_check
    _
  $region31: #{tpu_custom_call.1} parent=0 // pred_check_branch
    %177 = sbr.rel (0) target = $region33
  $region32: #{tpu_custom_call.1} parent=0 // pred_region
    _
  $region33: #{tpu_custom_call.1} parent=0 // pred_fallthru
    _
  // Predicated region
  $region34: #{tpu_custom_call.1} parent=0 // pred_check
    _
  $region35: #{tpu_custom_call.1} parent=0 // pred_check_branch
    %179 = sbr.rel (0) target = $region37
  $region36: #{tpu_custom_call.1} parent=0 // pred_region
    _
  $region37: #{tpu_custom_call.1} parent=0 // pred_fallthru
    _

</llo_original>
